<compile_context>
chip_gen: v5e
topology: v5e:2x2
jax: 0.10.0
libtpu: 0.0.40
codegen_flags: <defaults>
</compile_context>

<pallas_src>
import jax
import jax.numpy as jnp
from jax.experimental import pallas as pl
from jax.experimental.pallas import tpu as pltpu

HIDDEN = 32          # hidden_size
OUTPUT_SIZE = 64     # output_size (vocab)
MAX_LENGTH = 30      # attention length
MAX_LEN_PAD = 32     # padded attention length (lane friendly)
EMB_DIM = 32         # nn.Embedding(output_size, 32)
RGB_IN, RGB_OUT = 64, 256
DEEP_IN, DEEP_OUT = 64, 128
SCAN_IN, SCAN_OUT = 64, 128
FEAT_IN = RGB_IN + DEEP_IN + SCAN_IN   # 192
ACT_K = OUTPUT_SIZE + FEAT_IN          # 256  (fused input-dot contraction dim)
ACT_PAD = 384                          # [onehot|feats|hid|pad] lane-dense row
SLAB_W = 512                           # 4 x 128-lane tiles

# ------------------------------ kernel --------------------------------------


def decoder_kernel(act_ref, enc_ref, w_in_ref, w_slab_ref, b_slab_ref, out_ref):
    f32, bf16 = jnp.float32, jnp.bfloat16
    b = b_slab_ref[...]                                   # (1, 512) f32

    act = act_ref[...]                                    # (1, 384) f32
    hid = act[:, 256:288]                                 # (1, 32)  previous hidden

    # hid-LHS packed dot -> [r_h | z_h | n_h | attn_h] (+ [b_hr|b_hz|b_hn|b_attn])
    # attn pad lanes carry -1e9 bias so softmax sends them to 0.
    hp = jnp.dot(hid.astype(bf16), w_slab_ref[:, 0:128],
                 preferred_element_type=f32) + b[:, 0:128]          # (1, 128)

    # x = relu(cat_emb(cat(embedded, RGB, Deep, Scan)))  (dropout = identity)
    # embedding lookup is the onehot part of the fused LHS; b_cat folded in RHS.
    x = jnp.dot(act[:, 0:256].astype(bf16), w_in_ref[...],
                preferred_element_type=f32)
    x = jnp.maximum(x, 0.0)                                          # (1, 32)

    # x-LHS packed dot -> [attn_o | comb_o]  (+ [0 | b_comb])
    xp = jnp.dot(x.astype(bf16), w_slab_ref[:, 256:320],
                 preferred_element_type=f32) + b[:, 256:320]         # (1, 64)

    # attn_weights = softmax(attn(cat(x, hidden)))  (exact divide, pads -> 0)
    logits = xp[:, 0:32] + hp[:, 96:128]                             # (1, 32)
    m = jnp.max(logits, axis=-1, keepdims=True)
    e = jnp.exp(logits - m)
    attn_w = e / jnp.sum(e, axis=-1, keepdims=True)                  # (1, 32)

    # attn_combine(cat(x, attn_applied)) + ReLU, with W_comb_a pre-folded into
    # enc_fold = encoder_outputs @ W_comb_a (one dot instead of two chained).
    y = jnp.maximum(
        xp[:, 32:64] + jnp.dot(attn_w.astype(bf16), enc_ref[...],
                               preferred_element_type=f32), 0.0)     # (1, 32)

    # GRU cell (PyTorch nn.GRU equations); y-LHS packed dot -> [W_ir|W_iz|W_in]
    gi = jnp.dot(y.astype(bf16), w_slab_ref[:, 128:224],
                 preferred_element_type=f32) + b[:, 128:224]         # (1, 96)
    r = jax.nn.sigmoid(gi[:, 0:32] + hp[:, 0:32])      # lane-offset aligned adds
    z = jax.nn.sigmoid(gi[:, 32:64] + hp[:, 32:64])
    n = jnp.tanh(gi[:, 64:96] + r * hp[:, 64:96])
    h_new = (1.0 - z) * n + z * hid                                  # (1, 32)

    # output = log_softmax(out(gru_output))
    lo = jnp.dot(h_new.astype(bf16), w_slab_ref[:, 384:448],
                 preferred_element_type=f32) + b[:, 384:448]         # (1, 64)
    mo = jnp.max(lo, axis=-1, keepdims=True)
    lse = jnp.log(jnp.sum(jnp.exp(lo - mo), axis=-1, keepdims=True)) + mo
    log_probs = lo - lse                                             # (1, 64)

    # single lane-dense (1,128) store: [log_probs(64) | h_new(32) | attn_w(32)]
    out_ref[...] = jnp.concatenate([log_probs, h_new, attn_w], axis=-1)


# --------------------------- parameter handling ------------------------------


def init_params(key):
    """Original (unfolded) parameter set, mirroring the PyTorch module layout
    (weights pre-transposed to (in, out))."""
    shapes = {
        "embedding": (OUTPUT_SIZE, EMB_DIM),
        "w_rgb": (RGB_IN, RGB_OUT), "b_rgb": (1, RGB_OUT),
        "w_deep": (DEEP_IN, DEEP_OUT), "b_deep": (1, DEEP_OUT),
        "w_scan": (SCAN_IN, SCAN_OUT), "b_scan": (1, SCAN_OUT),
        "w_cat_e": (EMB_DIM, HIDDEN), "w_cat_rgb": (RGB_OUT, HIDDEN),
        "w_cat_deep": (DEEP_OUT, HIDDEN), "w_cat_scan": (SCAN_OUT, HIDDEN),
        "b_cat": (1, HIDDEN),
        "w_attn_o": (HIDDEN, MAX_LENGTH), "w_attn_h": (HIDDEN, MAX_LENGTH),
        "b_attn": (1, MAX_LENGTH),
        "w_comb_o": (HIDDEN, HIDDEN), "w_comb_a": (HIDDEN, HIDDEN),
        "b_comb": (1, HIDDEN),
        "w_ir": (HIDDEN, HIDDEN), "w_iz": (HIDDEN, HIDDEN), "w_in": (HIDDEN, HIDDEN),
        "w_hr": (HIDDEN, HIDDEN), "w_hz": (HIDDEN, HIDDEN), "w_hn": (HIDDEN, HIDDEN),
        "b_ir": (1, HIDDEN), "b_iz": (1, HIDDEN), "b_in": (1, HIDDEN),
        "b_hr": (1, HIDDEN), "b_hz": (1, HIDDEN), "b_hn": (1, HIDDEN),
        "w_out": (HIDDEN, OUTPUT_SIZE), "b_out": (1, OUTPUT_SIZE),
    }
    keys = jax.random.split(key, len(shapes))
    return {name: (0.05 * jax.random.normal(k, shape)).astype(jnp.float32)
            for (name, shape), k in zip(shapes.items(), keys)}


def pack_params(p):
    """Offline folding + lane packing (done once, outside the kernel)."""
    f32, bf16 = jnp.float32, jnp.bfloat16

    # Fold stand-in vision encoders into cat_emb (linear∘linear, eval mode => exact).
    w_rgb_f = p["w_rgb"] @ p["w_cat_rgb"]        # (64, 32)
    w_deep_f = p["w_deep"] @ p["w_cat_deep"]     # (64, 32)
    w_scan_f = p["w_scan"] @ p["w_cat_scan"]     # (64, 32)
    b_cat_eff = (p["b_cat"]
                 + p["b_rgb"] @ p["w_cat_rgb"]
                 + p["b_deep"] @ p["w_cat_deep"]
                 + p["b_scan"] @ p["w_cat_scan"])                        # (1, 32)
    w_feats_fold = jnp.concatenate([w_rgb_f, w_deep_f, w_scan_f], axis=0)  # (192,32)

    # Fold embedding + cat_emb embedding-slice + effective bias into the onehot rows.
    emb_fold = p["embedding"] @ p["w_cat_e"] + b_cat_eff                 # (64, 32)

    # Fused input-dot RHS: LHS is [onehot(64) | feats(192)]  ->  K = 256.
    w_in_fold = jnp.concatenate([emb_fold, w_feats_fold], axis=0).astype(bf16)

    # Pad attention weights/bias 30 -> 32 lanes (bias pad = -1e9 -> softmax 0).
    pad_w = jnp.zeros((HIDDEN, MAX_LEN_PAD - MAX_LENGTH), f32)
    w_attn_o = jnp.concatenate([p["w_attn_o"], pad_w], axis=1)           # (32, 32)
    w_attn_h = jnp.concatenate([p["w_attn_h"], pad_w], axis=1)           # (32, 32)
    b_attn = jnp.concatenate(
        [p["b_attn"], jnp.full((1, MAX_LEN_PAD - MAX_LENGTH), -1e9, f32)], axis=1)

    zw = lambda n: jnp.zeros((HIDDEN, n), f32)
    zb = lambda n: jnp.zeros((1, n), f32)

    # 512-lane slab; every per-dot RHS section (and its bias) starts at a
    # 128-lane tile boundary so result/bias adds are lane-offset aligned:
    #    0:128  hid-LHS   [W_hr | W_hz | W_hn | attn_h]
    #  128:224  y-LHS     [W_ir | W_iz | W_in]           (224:256 pad)
    #  256:320  x-LHS     [attn_o | comb_o]              (320:384 pad)
    #  384:448  h-LHS     [W_out]                        (448:512 pad)
    w_slab = jnp.concatenate(
        [p["w_hr"], p["w_hz"], p["w_hn"], w_attn_h,
         p["w_ir"], p["w_iz"], p["w_in"], zw(32),
         w_attn_o, p["w_comb_o"], zw(64),
         p["w_out"], zw(64)], axis=1).astype(bf16)                       # (32, 512)
    b_slab = jnp.concatenate(
        [p["b_hr"], p["b_hz"], p["b_hn"], b_attn,
         p["b_ir"], p["b_iz"], p["b_in"], zb(32),
         zb(32), p["b_comb"], zb(64),
         p["b_out"], zb(64)], axis=1)                                    # (1, 512) f32

    return {"w_in_fold": w_in_fold, "w_slab": w_slab, "b_slab": b_slab,
            "w_comb_a": p["w_comb_a"]}   # kept for the per-sequence enc fold


# ------------------------------- wrapper -------------------------------------


def attn_decoder_forward(packed, token, hidden, encoder_outputs, rgb, deep, scan):
    """token: () int32; hidden: (1,1,H); encoder_outputs: (MAX_LENGTH, H);
    rgb/deep/scan: (1, 64) stand-in raw features."""
    f32 = jnp.float32

    # One-hot token (the embedding lookup is folded into the fused input dot).
    tok = jnp.asarray(token, jnp.int32)
    onehot = (jax.lax.broadcasted_iota(jnp.int32, (1, OUTPUT_SIZE), 1) == tok
              ).astype(f32)                                              # (1, 64)
    hid = hidden.reshape(1, HIDDEN).astype(f32)
    feats = jnp.concatenate(
        [rgb.astype(f32), deep.astype(f32), scan.astype(f32)], axis=1)   # (1, 192)
    act = jnp.concatenate(
        [onehot, feats, hid, jnp.zeros((1, ACT_PAD - ACT_K - HIDDEN), f32)],
        axis=1)                                                          # (1, 384)

    # Fold attn_combine's attn_applied weight into the encoder outputs
    # (exact: bmm and the linear commute).  In a full decode loop this fold is
    # hoisted once per sequence.
    enc_pad = jnp.zeros((MAX_LEN_PAD, HIDDEN), f32).at[:MAX_LENGTH].set(
        encoder_outputs.astype(f32))                                     # (32, 32)
    enc_fold = (enc_pad @ packed["w_comb_a"]).astype(jnp.bfloat16)       # (32, 32)

    vmem = pl.BlockSpec(memory_space=pltpu.MemorySpace.VMEM)
    packed_out = pl.pallas_call(
        decoder_kernel,
        out_shape=jax.ShapeDtypeStruct((1, 128), f32),
        in_specs=[vmem, vmem, vmem, vmem, vmem],
        out_specs=vmem,
    )(act, enc_fold, packed["w_in_fold"], packed["w_slab"], packed["b_slab"])

    log_probs = packed_out[:, :OUTPUT_SIZE]                              # (1, 64)
    h_new = packed_out[:, OUTPUT_SIZE:OUTPUT_SIZE + HIDDEN]              # (1, 32)
    attn_w = packed_out[:, OUTPUT_SIZE + HIDDEN:
                        OUTPUT_SIZE + HIDDEN + MAX_LENGTH]               # (1, 30)
    return log_probs, h_new.reshape(1, 1, HIDDEN), attn_w


# --------------------------- pure-JAX reference -------------------------------


def reference_forward(p, token, hidden, encoder_outputs, rgb, deep, scan):
    emb = p["embedding"][token][None, :]
    hid = hidden.reshape(1, HIDDEN)
    rgb_e = rgb @ p["w_rgb"] + p["b_rgb"]
    deep_e = deep @ p["w_deep"] + p["b_deep"]
    scan_e = scan @ p["w_scan"] + p["b_scan"]
    x = (emb @ p["w_cat_e"] + rgb_e @ p["w_cat_rgb"] + deep_e @ p["w_cat_deep"]
         + scan_e @ p["w_cat_scan"] + p["b_cat"])
    x = jnp.maximum(x, 0.0)
    logits = x @ p["w_attn_o"] + hid @ p["w_attn_h"] + p["b_attn"]
    attn_w = jax.nn.softmax(logits, axis=-1)
    attn_applied = attn_w @ encoder_outputs
    y = jnp.maximum(x @ p["w_comb_o"] + attn_applied @ p["w_comb_a"] + p["b_comb"], 0.0)
    r = jax.nn.sigmoid(y @ p["w_ir"] + p["b_ir"] + hid @ p["w_hr"] + p["b_hr"])
    z = jax.nn.sigmoid(y @ p["w_iz"] + p["b_iz"] + hid @ p["w_hz"] + p["b_hz"])
    n = jnp.tanh(y @ p["w_in"] + p["b_in"] + r * (hid @ p["w_hn"] + p["b_hn"]))
    h_new = (1.0 - z) * n + z * hid
    lo = h_new @ p["w_out"] + p["b_out"]
    return jax.nn.log_softmax(lo, axis=-1), h_new.reshape(1, 1, HIDDEN), attn_w


if __name__ == "__main__":
    key = jax.random.PRNGKey(0)
    kp, ke, kr, kd, ks = jax.random.split(key, 5)

    params = init_params(kp)
    packed = pack_params(params)

    token = jnp.array(3, dtype=jnp.int32)
    hidden = jnp.zeros((1, 1, HIDDEN), jnp.float32)                      # initHidden()
    encoder_outputs = jax.random.normal(ke, (MAX_LENGTH, HIDDEN), jnp.float32)
    rgb_feat = jax.random.normal(kr, (1, RGB_IN), jnp.float32)
    deep_feat = jax.random.normal(kd, (1, DEEP_IN), jnp.float32)
    scan_feat = jax.random.normal(ks, (1, SCAN_IN), jnp.float32)

    fwd = jax.jit(attn_decoder_forward)
    out, h_new, attn_w = fwd(packed, token, hidden, encoder_outputs,
                             rgb_feat, deep_feat, scan_feat)
    jax.block_until_ready((out, h_new, attn_w))

    assert out.shape == (1, OUTPUT_SIZE)
    assert h_new.shape == (1, 1, HIDDEN)
    assert attn_w.shape == (1, MAX_LENGTH)
    # sanity: both softmaxes are exactly normalized (exact divides in-kernel)
    assert abs(float(jnp.sum(jnp.exp(out))) - 1.0) < 1e-3
    assert abs(float(jnp.sum(attn_w)) - 1.0) < 1e-3

    # compare against unfused pure-JAX f32 reference (kernel weights are bf16)
    r_out, r_h, r_aw = reference_forward(params, token, hidden, encoder_outputs,
                                         rgb_feat, deep_feat, scan_feat)
    assert float(jnp.max(jnp.abs(out - r_out))) < 2e-2
    assert float(jnp.max(jnp.abs(h_new - r_h))) < 2e-2
    assert float(jnp.max(jnp.abs(attn_w - r_aw))) < 2e-2

    print("KERNEL_OK")
</pallas_src>

<mosaic_0001>
module attributes {stable_mosaic.version = 11 : i64} {
  func.func @decoder_kernel(%arg0: memref<1x384xf32, #tpu.memory_space<vmem>>, %arg1: memref<32x32xbf16, #tpu.memory_space<vmem>>, %arg2: memref<256x32xbf16, #tpu.memory_space<vmem>>, %arg3: memref<32x512xbf16, #tpu.memory_space<vmem>>, %arg4: memref<1x512xf32, #tpu.memory_space<vmem>>, %arg5: memref<1x128xf32, #tpu.memory_space<vmem>>) attributes {dimension_semantics = [], scalar_prefetch = 0 : i64, scratch_operands = 0 : i64, tpu.core_type = #tpu.core_type<tc>} {
    %c0 = arith.constant 0 : index
    %c0_0 = arith.constant 0 : index
    %0 = vector.load %arg4[%c0, %c0_0] : memref<1x512xf32, #tpu.memory_space<vmem>>, vector<1x512xf32>
    %c0_1 = arith.constant 0 : index
    %c0_2 = arith.constant 0 : index
    %1 = vector.load %arg0[%c0_1, %c0_2] : memref<1x384xf32, #tpu.memory_space<vmem>>, vector<1x384xf32>
    %2 = vector.extract_strided_slice %1 {offsets = [0, 256], sizes = [1, 32], strides = [1, 1]} : vector<1x384xf32> to vector<1x32xf32>
    %3 = arith.truncf %2 : vector<1x32xf32> to vector<1x32xbf16>
    %c0_3 = arith.constant 0 : index
    %c0_4 = arith.constant 0 : index
    %4 = vector.load %arg3[%c0_3, %c0_4] : memref<32x512xbf16, #tpu.memory_space<vmem>>, vector<32x128xbf16>
    %cst = arith.constant dense<0.000000e+00> : vector<1x128xf32>
    %5 = tpu.matmul %3, %4, %cst {dimension_numbers = #tpu.dot_dimension_numbers<[1], [0], [0], [1], [0, 0, 1, 1], [], []>} : vector<1x32xbf16>, vector<32x128xbf16>, vector<1x128xf32> -> vector<1x128xf32>
    %6 = vector.extract_strided_slice %0 {offsets = [0, 0], sizes = [1, 128], strides = [1, 1]} : vector<1x512xf32> to vector<1x128xf32>
    %7 = arith.addf %5, %6 : vector<1x128xf32>
    %8 = vector.extract_strided_slice %1 {offsets = [0, 0], sizes = [1, 256], strides = [1, 1]} : vector<1x384xf32> to vector<1x256xf32>
    %9 = arith.truncf %8 : vector<1x256xf32> to vector<1x256xbf16>
    %c0_5 = arith.constant 0 : index
    %c0_6 = arith.constant 0 : index
    %10 = vector.load %arg2[%c0_5, %c0_6] : memref<256x32xbf16, #tpu.memory_space<vmem>>, vector<256x32xbf16>
    %cst_7 = arith.constant dense<0.000000e+00> : vector<1x32xf32>
    %11 = tpu.matmul %9, %10, %cst_7 {dimension_numbers = #tpu.dot_dimension_numbers<[1], [0], [0], [1], [0, 0, 1, 1], [], []>} : vector<1x256xbf16>, vector<256x32xbf16>, vector<1x32xf32> -> vector<1x32xf32>
    %cst_8 = arith.constant 0.000000e+00 : f32
    %12 = vector.broadcast %cst_8 : f32 to vector<1x32xf32>
    %13 = arith.maximumf %11, %12 : vector<1x32xf32>
    %14 = arith.truncf %13 : vector<1x32xf32> to vector<1x32xbf16>
    %c0_9 = arith.constant 0 : index
    %c256 = arith.constant 256 : index
    %15 = vector.load %arg3[%c0_9, %c256] : memref<32x512xbf16, #tpu.memory_space<vmem>>, vector<32x64xbf16>
    %cst_10 = arith.constant dense<0.000000e+00> : vector<1x64xf32>
    %16 = tpu.matmul %14, %15, %cst_10 {dimension_numbers = #tpu.dot_dimension_numbers<[1], [0], [0], [1], [0, 0, 1, 1], [], []>} : vector<1x32xbf16>, vector<32x64xbf16>, vector<1x64xf32> -> vector<1x64xf32>
    %17 = vector.extract_strided_slice %0 {offsets = [0, 256], sizes = [1, 64], strides = [1, 1]} : vector<1x512xf32> to vector<1x64xf32>
    %18 = arith.addf %16, %17 : vector<1x64xf32>
    %19 = vector.extract_strided_slice %18 {offsets = [0, 0], sizes = [1, 32], strides = [1, 1]} : vector<1x64xf32> to vector<1x32xf32>
    %20 = vector.extract_strided_slice %7 {offsets = [0, 96], sizes = [1, 32], strides = [1, 1]} : vector<1x128xf32> to vector<1x32xf32>
    %21 = arith.addf %19, %20 : vector<1x32xf32>
    %cst_11 = arith.constant dense<0xFF800000> : vector<1xf32>
    %22 = vector.multi_reduction <maximumf>, %21, %cst_11 [1] : vector<1x32xf32> to vector<1xf32>
    %23 = vector.shape_cast %22 : vector<1xf32> to vector<1x1xf32>
    %24 = vector.broadcast %23 : vector<1x1xf32> to vector<1x32xf32>
    %25 = arith.subf %21, %24 : vector<1x32xf32>
    %26 = math.exp %25 : vector<1x32xf32>
    %cst_12 = arith.constant dense<0.000000e+00> : vector<1xf32>
    %27 = vector.multi_reduction <add>, %26, %cst_12 [1] : vector<1x32xf32> to vector<1xf32>
    %28 = vector.shape_cast %27 : vector<1xf32> to vector<1x1xf32>
    %29 = vector.broadcast %28 : vector<1x1xf32> to vector<1x32xf32>
    %30 = arith.divf %26, %29 : vector<1x32xf32>
    %31 = vector.extract_strided_slice %18 {offsets = [0, 32], sizes = [1, 32], strides = [1, 1]} : vector<1x64xf32> to vector<1x32xf32>
    %32 = arith.truncf %30 : vector<1x32xf32> to vector<1x32xbf16>
    %c0_13 = arith.constant 0 : index
    %c0_14 = arith.constant 0 : index
    %33 = vector.load %arg1[%c0_13, %c0_14] : memref<32x32xbf16, #tpu.memory_space<vmem>>, vector<32x32xbf16>
    %cst_15 = arith.constant dense<0.000000e+00> : vector<1x32xf32>
    %34 = tpu.matmul %32, %33, %cst_15 {dimension_numbers = #tpu.dot_dimension_numbers<[1], [0], [0], [1], [0, 0, 1, 1], [], []>} : vector<1x32xbf16>, vector<32x32xbf16>, vector<1x32xf32> -> vector<1x32xf32>
    %35 = arith.addf %31, %34 : vector<1x32xf32>
    %cst_16 = arith.constant 0.000000e+00 : f32
    %36 = vector.broadcast %cst_16 : f32 to vector<1x32xf32>
    %37 = arith.maximumf %35, %36 : vector<1x32xf32>
    %38 = arith.truncf %37 : vector<1x32xf32> to vector<1x32xbf16>
    %c0_17 = arith.constant 0 : index
    %c128 = arith.constant 128 : index
    %39 = vector.load %arg3[%c0_17, %c128] : memref<32x512xbf16, #tpu.memory_space<vmem>>, vector<32x96xbf16>
    %cst_18 = arith.constant dense<0.000000e+00> : vector<1x96xf32>
    %40 = tpu.matmul %38, %39, %cst_18 {dimension_numbers = #tpu.dot_dimension_numbers<[1], [0], [0], [1], [0, 0, 1, 1], [], []>} : vector<1x32xbf16>, vector<32x96xbf16>, vector<1x96xf32> -> vector<1x96xf32>
    %41 = vector.extract_strided_slice %0 {offsets = [0, 128], sizes = [1, 96], strides = [1, 1]} : vector<1x512xf32> to vector<1x96xf32>
    %42 = arith.addf %40, %41 : vector<1x96xf32>
    %43 = vector.extract_strided_slice %42 {offsets = [0, 0], sizes = [1, 32], strides = [1, 1]} : vector<1x96xf32> to vector<1x32xf32>
    %44 = vector.extract_strided_slice %7 {offsets = [0, 0], sizes = [1, 32], strides = [1, 1]} : vector<1x128xf32> to vector<1x32xf32>
    %45 = arith.addf %43, %44 : vector<1x32xf32>
    %46 = arith.negf %45 : vector<1x32xf32>
    %47 = math.exp %46 : vector<1x32xf32>
    %cst_19 = arith.constant 1.000000e+00 : f32
    %48 = vector.broadcast %cst_19 : f32 to vector<1x32xf32>
    %49 = arith.addf %48, %47 : vector<1x32xf32>
    %50 = arith.divf %48, %49 : vector<1x32xf32>
    %51 = vector.extract_strided_slice %42 {offsets = [0, 32], sizes = [1, 32], strides = [1, 1]} : vector<1x96xf32> to vector<1x32xf32>
    %52 = vector.extract_strided_slice %7 {offsets = [0, 32], sizes = [1, 32], strides = [1, 1]} : vector<1x128xf32> to vector<1x32xf32>
    %53 = arith.addf %51, %52 : vector<1x32xf32>
    %54 = arith.negf %53 : vector<1x32xf32>
    %55 = math.exp %54 : vector<1x32xf32>
    %cst_20 = arith.constant 1.000000e+00 : f32
    %56 = vector.broadcast %cst_20 : f32 to vector<1x32xf32>
    %57 = arith.addf %56, %55 : vector<1x32xf32>
    %58 = arith.divf %56, %57 : vector<1x32xf32>
    %59 = vector.extract_strided_slice %42 {offsets = [0, 64], sizes = [1, 32], strides = [1, 1]} : vector<1x96xf32> to vector<1x32xf32>
    %60 = vector.extract_strided_slice %7 {offsets = [0, 64], sizes = [1, 32], strides = [1, 1]} : vector<1x128xf32> to vector<1x32xf32>
    %61 = arith.mulf %50, %60 : vector<1x32xf32>
    %62 = arith.addf %59, %61 : vector<1x32xf32>
    %63 = math.tanh %62 : vector<1x32xf32>
    %cst_21 = arith.constant 1.000000e+00 : f32
    %64 = vector.broadcast %cst_21 : f32 to vector<1x32xf32>
    %65 = arith.subf %64, %58 : vector<1x32xf32>
    %66 = arith.mulf %65, %63 : vector<1x32xf32>
    %67 = arith.mulf %58, %2 : vector<1x32xf32>
    %68 = arith.addf %66, %67 : vector<1x32xf32>
    %69 = arith.truncf %68 : vector<1x32xf32> to vector<1x32xbf16>
    %c0_22 = arith.constant 0 : index
    %c384 = arith.constant 384 : index
    %70 = vector.load %arg3[%c0_22, %c384] : memref<32x512xbf16, #tpu.memory_space<vmem>>, vector<32x64xbf16>
    %cst_23 = arith.constant dense<0.000000e+00> : vector<1x64xf32>
    %71 = tpu.matmul %69, %70, %cst_23 {dimension_numbers = #tpu.dot_dimension_numbers<[1], [0], [0], [1], [0, 0, 1, 1], [], []>} : vector<1x32xbf16>, vector<32x64xbf16>, vector<1x64xf32> -> vector<1x64xf32>
    %72 = vector.extract_strided_slice %0 {offsets = [0, 384], sizes = [1, 64], strides = [1, 1]} : vector<1x512xf32> to vector<1x64xf32>
    %73 = arith.addf %71, %72 : vector<1x64xf32>
    %cst_24 = arith.constant dense<0xFF800000> : vector<1xf32>
    %74 = vector.multi_reduction <maximumf>, %73, %cst_24 [1] : vector<1x64xf32> to vector<1xf32>
    %75 = vector.shape_cast %74 : vector<1xf32> to vector<1x1xf32>
    %76 = vector.broadcast %75 : vector<1x1xf32> to vector<1x64xf32>
    %77 = arith.subf %73, %76 : vector<1x64xf32>
    %78 = math.exp %77 : vector<1x64xf32>
    %cst_25 = arith.constant dense<0.000000e+00> : vector<1xf32>
    %79 = vector.multi_reduction <add>, %78, %cst_25 [1] : vector<1x64xf32> to vector<1xf32>
    %80 = vector.shape_cast %79 : vector<1xf32> to vector<1x1xf32>
    %81 = math.log %80 : vector<1x1xf32>
    %82 = arith.addf %81, %75 : vector<1x1xf32>
    %83 = vector.broadcast %82 : vector<1x1xf32> to vector<1x64xf32>
    %84 = arith.subf %73, %83 : vector<1x64xf32>
    %85 = tpu.concatenate %84, %68, %30 in 1 : vector<1x64xf32>, vector<1x32xf32>, vector<1x32xf32> -> vector<1x128xf32>
    %c0_26 = arith.constant 0 : index
    %c0_27 = arith.constant 0 : index
    %86 = vector.load %arg5[%c0_26, %c0_27] : memref<1x128xf32, #tpu.memory_space<vmem>>, vector<1x128xf32>
    tpu.vector_store %arg5[%c0_26, %c0_27], %85 {strides = array<i32>} : memref<1x128xf32, #tpu.memory_space<vmem>>, vector<1x128xf32>,
    return
  }
}

</mosaic_0001>

<llo_original>
// kernel: attn_decoder_forward.1
$region0: #{attn_decoder_forward.1}
  #allocation0 [shape = 'u32[]', space=smem, size = 0x4, offset = 0x4, fixed_abs, tag = 'smem constant byte address 0x4 - core index']
  #allocation1 [shape = 'u32[72,128]{1,0:T(1,128)}', space=vmem, size = 0x9000, scoped, tag = 'internal scratch']
  %s0 = inlined_call_operand.vmem [shape: f32[1,384], index: 0, kind: input, shape index: {}]
  %s1 = inlined_call_operand.vmem [shape: bf16[32,32], index: 1, kind: input, shape index: {}]
  %s2 = inlined_call_operand.vmem [shape: bf16[256,32], index: 2, kind: input, shape index: {}]
  %s3 = inlined_call_operand.vmem [shape: bf16[32,512], index: 3, kind: input, shape index: {}]
  %s4 = inlined_call_operand.vmem [shape: f32[1,512], index: 4, kind: input, shape index: {}]
  %s5 = inlined_call_operand.vmem [shape: f32[1,128], index: 5, kind: output, shape index: {}]
  %s6 = sld [smem:[#allocation0]]
  $region30: #{attn_decoder_forward.1} parent=0
    _
  %s8 = ssub.s32 1, %s6
  %s9 = scalar_select 0, %s8, %s6
  // Predicated region
  $region2: #{attn_decoder_forward.1} parent=0 // pred_check
    _
  $region3: #{attn_decoder_forward.1} parent=0 // pred_check_branch
    %11 = sbr.rel (0) target = $region5
  $region4: #{attn_decoder_forward.1} parent=0 // pred_region
    _
  $region5: #{attn_decoder_forward.1} parent=0 // pred_fallthru
    _
  // Predicated region
  $region6: #{attn_decoder_forward.1} parent=0 // pred_check
    _
  $region7: #{attn_decoder_forward.1} parent=0 // pred_check_branch
    %13 = sbr.rel (0) target = $region9
  $region8: #{attn_decoder_forward.1} parent=0 // pred_region
    _
  $region9: #{attn_decoder_forward.1} parent=0 // pred_fallthru
    _
  // Predicated region
  $region10: #{attn_decoder_forward.1} parent=0 // pred_check
    _
  $region11: #{attn_decoder_forward.1} parent=0 // pred_check_branch
    %15 = sbr.rel (0) target = $region13
  $region12: #{attn_decoder_forward.1} parent=0 // pred_region
    _
  $region13: #{attn_decoder_forward.1} parent=0 // pred_fallthru
    _
  // Predicated region
  $region14: #{attn_decoder_forward.1} parent=0 // pred_check
    _
  $region15: #{attn_decoder_forward.1} parent=0 // pred_check_branch
    %17 = sbr.rel (0) target = $region17
  $region16: #{attn_decoder_forward.1} parent=0 // pred_region
    _
  $region17: #{attn_decoder_forward.1} parent=0 // pred_fallthru
    _
  // Predicated region
  $region18: #{attn_decoder_forward.1} parent=0 // pred_check
    _
  $region19: #{attn_decoder_forward.1} parent=0 // pred_check_branch
    %19 = sbr.rel (0) target = $region21
  $region20: #{attn_decoder_forward.1} parent=0 // pred_region
    _
  $region21: #{attn_decoder_forward.1} parent=0 // pred_fallthru
    _
  %v21 = vld [vmem:[%s4] sm:$0xf]
  %v22 = vld [vmem:[%s0] sm:$0x7]
  %v24 = vperm.slane %v22, 2
  %v26 = vpack.c.bf16 %v24, %v24
  %v27 = vld [vmem:[%s3] sm:$0xf]
  %v28 = vld [vmem:[%s3 + $0x10] sm:$0xf]
  %v29 = vld [vmem:[%s3 + $0x20] sm:$0xf]
  %v30 = vld [vmem:[%s3 + $0x30] sm:$0xf]
  %v35 = vunpack.c.l.b16 %v27
  %v36 = vunpack.c.l.b16 %v28
  %v37 = vunpack.c.l.b16 %v29
  %v38 = vunpack.c.l.b16 %v30
  %v39 = vpack.c.b16 %v36, %v35
  %v40 = vpack.c.b16 %v38, %v37
  %vm43 = vcmask 261120
  %v45 = vsel %vm43, %v26, 0
  %47 = vmatpush.bf16.msra.mxu0 0
  %48 = vmatpush.bf16.msra.mxu0 0
  %49 = vmatpush.bf16.msra.mxu0 0
  %50 = vmatpush.bf16.msra.mxu0 0
  %51 = vmatpush.bf16.msra.mxu0 0
  %52 = vmatpush.bf16.msra.mxu0 0
  %53 = vmatpush.bf16.msra.mxu0 %v40
  %54 = vmatpush.bf16.msra.mxu0 %v39
  %55 = vmatmul.bf16.gmra.mxu0 %v45
  %v56 = vpop.f32.mrf.mxu0
  %v57 = vadd.f32 %v21, %v56
  %v58 = vpop.f32.mrf.mxu0
  %59 = vdwg.mxu0
  %v60 = vperm.slane %v22, 0
  %v61 = vperm.slane %v22, 1
  %v64 = vpack.c.bf16 %v60, %v60
  %v65 = vpack.c.bf16 %v61, %v61
  %v66 = vld [vmem:[%s2] sm:$0xf]
  %v67 = vld [vmem:[%s2 + $0x4] sm:$0xf]
  %v68 = vld [vmem:[%s2 + $0x8] sm:$0xf]
  %v69 = vld [vmem:[%s2 + $0xc] sm:$0xf]
  %v70 = vld [vmem:[%s2 + $0x10] sm:$0xf]
  %v71 = vld [vmem:[%s2 + $0x14] sm:$0xf]
  %v72 = vld [vmem:[%s2 + $0x18] sm:$0xf]
  %v73 = vld [vmem:[%s2 + $0x1c] sm:$0xf]
  %v74 = vld [vmem:[%s2 + $0x20] sm:$0xf]
  %v75 = vld [vmem:[%s2 + $0x24] sm:$0xf]
  %v76 = vld [vmem:[%s2 + $0x28] sm:$0xf]
  %v77 = vld [vmem:[%s2 + $0x2c] sm:$0xf]
  %v78 = vld [vmem:[%s2 + $0x30] sm:$0xf]
  %v79 = vld [vmem:[%s2 + $0x34] sm:$0xf]
  %v80 = vld [vmem:[%s2 + $0x38] sm:$0xf]
  %v81 = vld [vmem:[%s2 + $0x3c] sm:$0xf]
  %v82 = vld [vmem:[%s2 + $0x40] sm:$0xf]
  %v83 = vld [vmem:[%s2 + $0x44] sm:$0xf]
  %v84 = vld [vmem:[%s2 + $0x48] sm:$0xf]
  %v85 = vld [vmem:[%s2 + $0x4c] sm:$0xf]
  %v86 = vld [vmem:[%s2 + $0x50] sm:$0xf]
  %v87 = vld [vmem:[%s2 + $0x54] sm:$0xf]
  %v88 = vld [vmem:[%s2 + $0x58] sm:$0xf]
  %v89 = vld [vmem:[%s2 + $0x5c] sm:$0xf]
  %v90 = vld [vmem:[%s2 + $0x60] sm:$0xf]
  %v91 = vld [vmem:[%s2 + $0x64] sm:$0xf]
  %v92 = vld [vmem:[%s2 + $0x68] sm:$0xf]
  %v93 = vld [vmem:[%s2 + $0x6c] sm:$0xf]
  %v94 = vld [vmem:[%s2 + $0x70] sm:$0xf]
  %v95 = vld [vmem:[%s2 + $0x74] sm:$0xf]
  %v96 = vld [vmem:[%s2 + $0x78] sm:$0xf]
  %v97 = vld [vmem:[%s2 + $0x7c] sm:$0xf]
  %v130 = vunpack.c.l.b16 %v66
  %v131 = vunpack.c.l.b16 %v67
  %v132 = vunpack.c.l.b16 %v68
  %v133 = vunpack.c.l.b16 %v69
  %v134 = vunpack.c.l.b16 %v70
  %v135 = vunpack.c.l.b16 %v71
  %v136 = vunpack.c.l.b16 %v72
  %v137 = vunpack.c.l.b16 %v73
  %v138 = vunpack.c.l.b16 %v74
  %v139 = vunpack.c.l.b16 %v75
  %v140 = vunpack.c.l.b16 %v76
  %v141 = vunpack.c.l.b16 %v77
  %v142 = vunpack.c.l.b16 %v78
  %v143 = vunpack.c.l.b16 %v79
  %v144 = vunpack.c.l.b16 %v80
  %v145 = vunpack.c.l.b16 %v81
  %v146 = vunpack.c.l.b16 %v82
  %v147 = vunpack.c.l.b16 %v83
  %v148 = vunpack.c.l.b16 %v84
  %v149 = vunpack.c.l.b16 %v85
  %v150 = vunpack.c.l.b16 %v86
  %v151 = vunpack.c.l.b16 %v87
  %v152 = vunpack.c.l.b16 %v88
  %v153 = vunpack.c.l.b16 %v89
  %v154 = vunpack.c.l.b16 %v90
  %v155 = vunpack.c.l.b16 %v91
  %v156 = vunpack.c.l.b16 %v92
  %v157 = vunpack.c.l.b16 %v93
  %v158 = vunpack.c.l.b16 %v94
  %v159 = vunpack.c.l.b16 %v95
  %v160 = vunpack.c.l.b16 %v96
  %v161 = vunpack.c.l.b16 %v97
  %v162 = vpack.c.b16 %v131, %v130
  %v163 = vpack.c.b16 %v133, %v132
  %v164 = vpack.c.b16 %v135, %v134
  %v165 = vpack.c.b16 %v137, %v136
  %v166 = vpack.c.b16 %v139, %v138
  %v167 = vpack.c.b16 %v141, %v140
  %v168 = vpack.c.b16 %v143, %v142
  %v169 = vpack.c.b16 %v145, %v144
  %v170 = vpack.c.b16 %v147, %v146
  %v171 = vpack.c.b16 %v149, %v148
  %v172 = vpack.c.b16 %v151, %v150
  %v173 = vpack.c.b16 %v153, %v152
  %v174 = vpack.c.b16 %v155, %v154
  %v175 = vpack.c.b16 %v157, %v156
  %v176 = vpack.c.b16 %v159, %v158
  %v177 = vpack.c.b16 %v161, %v160
  %194 = vmatpush.bf16.msra.mxu0 %v169
  %195 = vmatpush.bf16.msra.mxu0 %v168
  %196 = vmatpush.bf16.msra.mxu0 %v167
  %197 = vmatpush.bf16.msra.mxu0 %v166
  %198 = vmatpush.bf16.msra.mxu0 %v165
  %199 = vmatpush.bf16.msra.mxu0 %v164
  %200 = vmatpush.bf16.msra.mxu0 %v163
  %201 = vmatpush.bf16.msra.mxu0 %v162
  %202 = vmatmul.bf16.gmra.mxu0 %v64
  %v203 = vpop.f32.mrf.mxu0
  %v204 = vadd.f32 0.0, %v203
  %v205 = vpop.f32.mrf.mxu0
  %206 = vdwg.mxu0
  %207 = vmatpush.bf16.msra.mxu0 %v177
  %208 = vmatpush.bf16.msra.mxu0 %v176
  %209 = vmatpush.bf16.msra.mxu0 %v175
  %210 = vmatpush.bf16.msra.mxu0 %v174
  %211 = vmatpush.bf16.msra.mxu0 %v173
  %212 = vmatpush.bf16.msra.mxu0 %v172
  %213 = vmatpush.bf16.msra.mxu0 %v171
  %214 = vmatpush.bf16.msra.mxu0 %v170
  %215 = vmatmul.bf16.gmra.mxu0 %v65
  %v216 = vpop.f32.mrf.mxu0
  %v217 = vadd.f32 %v204, %v216
  %v218 = vpop.f32.mrf.mxu0
  %219 = vdwg.mxu0
  %v220 = vmax.f32 %v217, 0.0
  %v221 = vpack.c.bf16 %v220, %v220
  %v222 = vld [vmem:[%s3 + $0x8] sm:$0xf]
  %v223 = vld [vmem:[%s3 + $0x18] sm:$0xf]
  %v224 = vld [vmem:[%s3 + $0x28] sm:$0xf]
  %v225 = vld [vmem:[%s3 + $0x38] sm:$0xf]
  %v230 = vunpack.c.l.b16 %v222
  %v231 = vunpack.c.l.b16 %v223
  %v232 = vunpack.c.l.b16 %v224
  %v233 = vunpack.c.l.b16 %v225
  %v234 = vpack.c.b16 %v231, %v230
  %v235 = vpack.c.b16 %v233, %v232
  %v239 = vperm.slane %v21, 2
  %v242 = vsel %vm43, %v221, 0
  %244 = vmatpush.bf16.msra.mxu0 0
  %245 = vmatpush.bf16.msra.mxu0 0
  %246 = vmatpush.bf16.msra.mxu0 0
  %247 = vmatpush.bf16.msra.mxu0 0
  %248 = vmatpush.bf16.msra.mxu0 0
  %249 = vmatpush.bf16.msra.mxu0 0
  %250 = vmatpush.bf16.msra.mxu0 %v235
  %251 = vmatpush.bf16.msra.mxu0 %v234
  %252 = vmatmul.bf16.gmra.mxu0 %v242
  %v253 = vpop.f32.mrf.mxu0
  %v254 = vadd.f32 %v239, %v253
  %v255 = vpop.f32.mrf.mxu0
  %256 = vdwg.mxu0
  %258 = vrot.lane.b32.xlu0 %v57, 32
  %v259 = vpop.permute.xlu0 %258
  %v261 = vadd.f32 %v254, %v259
  %vm262 = vcmask 253952
  %v263 = vsel %vm262, %v261, -inf
  %264 = vmax.xlane.f32.xlu0 %v263
  %v265 = vpop.xlane.xlu0 %264
  %v266 = vsub.f32 %v261, %v265
  %v267 = vmul.f32 %v266, 1.442695
  %v268 = vpow.pop %v267
  %v269 = vsel %vm262, %v268, 0.0
  %270 = vadd.xlane.f32.xlu0 %v269
  %v271 = vpop.xlane.xlu0 %270
  %v272 = vrcp.pop %v271
  %v273 = vmul.f32 %v271, %v272
  %v274 = vsub.f32 1.0, %v273
  %v275 = vmul.f32 %v272, %v274
  %v276 = vadd.f32 %v272, %v275
  %vm277 = vweird.f32 %v271
  %vm278 = vweird.f32 %v272
  %vm279 = vmor %vm277, %vm278
  %v280 = vsel %vm279, %v272, %v276
  %v281 = vand.u32 2147483647, %v271
  %vm282 = vcmp.eq.f32.partialorder %v281, 8.507059e+37
  %v283 = vand.u32 %v271, 2147483648
  %v284 = vor.u32 1.1754944e-38, %v283
  %v285 = vsel %vm282, %v284, %v280
  %v286 = vmul.f32 %v268, %v285
  %v287 = vpack.c.bf16 %v286, %v286
  %v288 = vld [vmem:[%s1] sm:$0xf]
  %v289 = vld [vmem:[%s1 + $0x4] sm:$0xf]
  %v290 = vld [vmem:[%s1 + $0x8] sm:$0xf]
  %v291 = vld [vmem:[%s1 + $0xc] sm:$0xf]
  %v296 = vunpack.c.l.b16 %v288
  %v297 = vunpack.c.l.b16 %v289
  %v298 = vunpack.c.l.b16 %v290
  %v299 = vunpack.c.l.b16 %v291
  %v300 = vpack.c.b16 %v297, %v296
  %v301 = vpack.c.b16 %v299, %v298
  %v305 = vsel %vm43, %v287, 0
  %307 = vmatpush.bf16.msra.mxu0 0
  %308 = vmatpush.bf16.msra.mxu0 0
  %309 = vmatpush.bf16.msra.mxu0 0
  %310 = vmatpush.bf16.msra.mxu0 0
  %311 = vmatpush.bf16.msra.mxu0 0
  %312 = vmatpush.bf16.msra.mxu0 0
  %313 = vmatpush.bf16.msra.mxu0 %v301
  %314 = vmatpush.bf16.msra.mxu0 %v300
  %315 = vmatmul.bf16.gmra.mxu0 %v305
  %v316 = vpop.f32.mrf.mxu0
  %v317 = vadd.f32 0.0, %v316
  %v318 = vpop.f32.mrf.mxu0
  %319 = vdwg.mxu0
  %321 = vrot.lane.b32.xlu0 %v317, 32
  %v322 = vpop.permute.xlu0 %321
  %v324 = vadd.f32 %v254, %v322
  %v325 = vmax.f32 %v324, 0.0
  %v326 = vpack.c.bf16 %v325, %v325
  %v327 = vld [vmem:[%s3 + $0x4] sm:$0xf]
  %v328 = vld [vmem:[%s3 + $0x14] sm:$0xf]
  %v329 = vld [vmem:[%s3 + $0x24] sm:$0xf]
  %v330 = vld [vmem:[%s3 + $0x34] sm:$0xf]
  %332 = vrot.lane.b32.xlu0 %v326, 96
  %v333 = vpop.permute.xlu0 %332
  %v338 = vunpack.c.l.b16 %v327
  %v339 = vunpack.c.l.b16 %v328
  %v340 = vunpack.c.l.b16 %v329
  %v341 = vunpack.c.l.b16 %v330
  %v342 = vpack.c.b16 %v339, %v338
  %v343 = vpack.c.b16 %v341, %v340
  %v346 = vperm.slane %v21, 1
  %v349 = vsel %vm43, %v333, 0
  %351 = vmatpush.bf16.msra.mxu0 0
  %352 = vmatpush.bf16.msra.mxu0 0
  %353 = vmatpush.bf16.msra.mxu0 0
  %354 = vmatpush.bf16.msra.mxu0 0
  %355 = vmatpush.bf16.msra.mxu0 0
  %356 = vmatpush.bf16.msra.mxu0 0
  %357 = vmatpush.bf16.msra.mxu0 %v343
  %358 = vmatpush.bf16.msra.mxu0 %v342
  %359 = vmatmul.bf16.gmra.mxu0 %v349
  %v360 = vpop.f32.mrf.mxu0
  %v361 = vadd.f32 %v346, %v360
  %v362 = vpop.f32.mrf.mxu0
  %363 = vdwg.mxu0
  %v364 = vadd.f32 %v361, %v57
  %v365 = vxor.u32 %v364, 2147483648
  %v366 = vmul.f32 %v365, 1.442695
  %v367 = vpow.pop %v366
  %v368 = vadd.f32 %v367, 1.0
  %v369 = vrcp.pop %v368
  %v370 = vmul.f32 %v368, %v369
  %v371 = vsub.f32 1.0, %v370
  %v372 = vmul.f32 %v369, %v371
  %v373 = vadd.f32 %v369, %v372
  %vm374 = vweird.f32 %v368
  %vm375 = vweird.f32 %v369
  %vm376 = vmor %vm374, %vm375
  %v377 = vsel %vm376, %v369, %v373
  %v378 = vand.u32 2147483647, %v368
  %vm379 = vcmp.eq.f32.partialorder %v378, 8.507059e+37
  %v380 = vand.u32 %v368, 2147483648
  %v381 = vor.u32 1.1754944e-38, %v380
  %v382 = vsel %vm379, %v381, %v377
  %v383 = vmul.f32 1.0, %v382
  %384 = vrot.lane.b32.xlu0 %v57, 64
  %v385 = vpop.permute.xlu0 %384
  %v387 = vmul.f32 %v383, %v385
  %389 = vrot.lane.b32.xlu0 %v387, 64
  %v390 = vpop.permute.xlu0 %389
  %v392 = vadd.f32 %v361, %v390
  %v393 = vtanh.pop %v392
  %v394 = vsub.f32 1.0, %v383
  %396 = vrot.lane.b32.xlu0 %v393, 96
  %v397 = vpop.permute.xlu0 %396
  %v399 = vmul.f32 %v394, %v397
  %400 = vrot.lane.b32.xlu0 %v24, 32
  %v401 = vpop.permute.xlu0 %400
  %v403 = vmul.f32 %v383, %v401
  %v404 = vadd.f32 %v399, %v403
  %v405 = vpack.c.bf16 %v404, %v404
  %v406 = vld [vmem:[%s3 + $0xc] sm:$0xf]
  %v407 = vld [vmem:[%s3 + $0x1c] sm:$0xf]
  %v408 = vld [vmem:[%s3 + $0x2c] sm:$0xf]
  %v409 = vld [vmem:[%s3 + $0x3c] sm:$0xf]
  %411 = vrot.lane.b32.xlu0 %v405, 96
  %v412 = vpop.permute.xlu0 %411
  %v417 = vunpack.c.l.b16 %v406
  %v418 = vunpack.c.l.b16 %v407
  %v419 = vunpack.c.l.b16 %v408
  %v420 = vunpack.c.l.b16 %v409
  %v421 = vpack.c.b16 %v418, %v417
  %v422 = vpack.c.b16 %v420, %v419
  %v425 = vperm.slane %v21, 3
  %v428 = vsel %vm43, %v412, 0
  %430 = vmatpush.bf16.msra.mxu0 0
  %431 = vmatpush.bf16.msra.mxu0 0
  %432 = vmatpush.bf16.msra.mxu0 0
  %433 = vmatpush.bf16.msra.mxu0 0
  %434 = vmatpush.bf16.msra.mxu0 0
  %435 = vmatpush.bf16.msra.mxu0 0
  %436 = vmatpush.bf16.msra.mxu0 %v422
  %437 = vmatpush.bf16.msra.mxu0 %v421
  %438 = vmatmul.bf16.gmra.mxu0 %v428
  %v439 = vpop.f32.mrf.mxu0
  %v440 = vadd.f32 %v425, %v439
  %v441 = vpop.f32.mrf.mxu0
  %442 = vdwg.mxu0
  %vm443 = vcmask 516096
  %v444 = vsel %vm443, %v440, -inf
  %445 = vmax.xlane.f32.xlu0 %v444
  %v446 = vpop.xlane.xlu0 %445
  %v447 = vsub.f32 %v440, %v446
  %v448 = vmul.f32 %v447, 1.442695
  %v449 = vpow.pop %v448
  %v450 = vsel %vm443, %v449, 0.0
  %451 = vadd.xlane.f32.xlu0 %v450
  %v452 = vpop.xlane.xlu0 %451
  %v453 = vlog2.pop %v452
  %v454 = vmul.f32 %v453, 0.6931472
  %v455 = vadd.f32 %v454, %v446
  %v456 = vsub.f32 %v440, %v455
  %458 = vrot.lane.b32.xlu0 %v404, 32
  %v459 = vpop.permute.xlu0 %458
  %462 = vrot.lane.b32.xlu0 %v286, 96
  %v463 = vpop.permute.xlu0 %462
  %vm465 = vcmask 523264
  %v466 = vsel %vm465, %v456, %v459
  %vm467 = vcmask 785408
  %v468 = vsel %vm467, %v466, %v463
  %469 = vst [vmem:[%s5] sm:$0x1] %v468
  // Predicated region
  $region22: #{attn_decoder_forward.1} parent=0 // pred_check
    _
  $region23: #{attn_decoder_forward.1} parent=0 // pred_check_branch
    %471 = sbr.rel (0) target = $region25
  $region24: #{attn_decoder_forward.1} parent=0 // pred_region
    _
  $region25: #{attn_decoder_forward.1} parent=0 // pred_fallthru
    _
  // Predicated region
  $region26: #{attn_decoder_forward.1} parent=0 // pred_check
    _
  $region27: #{attn_decoder_forward.1} parent=0 // pred_check_branch
    %473 = sbr.rel (0) target = $region29
  $region28: #{attn_decoder_forward.1} parent=0 // pred_region
    _
  $region29: #{attn_decoder_forward.1} parent=0 // pred_fallthru
    _

</llo_original>
